<compile_context>
chip_gen: v6e
topology: v6e:2x2x1
jax: 0.10.0
libtpu: 0.0.40
codegen_flags: <defaults>
</compile_context>

<pallas_src>
import functools

import jax
import jax.numpy as jnp
import numpy as np
from jax.experimental import pallas as pl
from jax.experimental.pallas import tpu as pltpu


def _per_example_gate_kernel(x_ref, w_ref, b_ref, r_ref, out_ref, *, k, m, n, gamma):
    kn = k * n
    x = x_ref[...]                                       # (TB, p) f32

    # One fused MXU matmul: selector logits (n-expanded) + per-bit gate logits
    # (expert-expanded), 128 lanes total for (k, m, n) = (4, 3, 8).
    y = jnp.dot(x, w_ref[...], preferred_element_type=jnp.float32) + b_ref[...]
    glog = y[:, :kn]                                     # (TB, k*n) selector logits
    wexp = y[:, kn:]                                     # (TB, m*k*n) gate logits

    # Smooth step on the packed gate-logit block (t*t reused).  Keep the double
    # where: the cubic re-enters (0,1) outside [-gamma/2, gamma/2].
    half = 0.5 * gamma
    a3 = -2.0 / (gamma ** 3)
    a1 = 3.0 / (2.0 * gamma)
    t2 = wexp * wexp
    poly = a3 * t2 * wexp + a1 * wexp + 0.5
    soft = jnp.where(wexp <= -half, 0.0, jnp.where(wexp >= half, 1.0, poly))

    # Per-bit factors for all k selectors at once on a (TB, k*n) block.
    # Lane l within a bit-block maps to expert j = l % n (LSB-first bits).
    lane = jax.lax.broadcasted_iota(jnp.int32, (1, kn), 1)
    expert = lane & (n - 1)                              # n is a power of two
    probs = None
    for i in range(m):                                   # m is small; static unroll
        blk = soft[:, i * kn:(i + 1) * kn]               # (TB, k*n)
        bit = ((expert >> i) & 1) == 1
        factor = jnp.where(bit, blk, 1.0 - blk)          # no materialised 1-soft
        probs = factor if probs is None else probs * factor

    # Softmax over the k selectors, computed directly on the n-expanded layout.
    # Lane sum = n * true denominator; the 1/n correction is folded into R.
    gmax = jnp.max(glog, axis=1, keepdims=True)
    e = jnp.exp(glog - gmax)
    denom = jnp.sum(e, axis=1, keepdims=True)
    inv = pl.reciprocal(denom, approx=True)              # EUP vrcp
    inv = inv * (2.0 - denom * inv)                      # one Newton step (~2^-26)
    weights = e * inv                                    # (TB, k*n), scaled by 1/n

    # Reduce over selectors with a tiny one-hot matmul; R carries the n rescale.
    mix = jnp.dot(weights * probs, r_ref[...], preferred_element_type=jnp.float32)
    # TODO(synk): (tb, n=8) is still a masked 8-of-128-lane store; the F-fold
    # wrapper restructure would make it lane-dense.
    out_ref[...] = mix.astype(out_ref.dtype)


def _round_up(a, b):
    return (a + b - 1) // b * b


def per_example_gate(x, G_w, G_b, W_w, W_b, *, k, m, gamma=0.5, tile_b=4096):
    """x: (B, p); G_w: (k, p); G_b: (k,); W_w: (k*m, p); W_b: (k*m,)."""
    B, p = x.shape
    n = 2 ** m
    kn = k * n
    width = (m + 1) * kn

    # --- Fused, lane-expanded weight / bias (built once, resident in VMEM) ---
    # Selector block: each G column repeated n times (selector-major).
    g_cols = jnp.repeat(G_w.T, n, axis=1)                          # (p, k*n)
    g_bias = jnp.repeat(G_b, n)                                    # (k*n,)
    # One block per bit i: selector kk's column W_w[kk*m + i], repeated n times.
    w_blocks, b_blocks = [], []
    for i in range(m):
        idx = jnp.asarray(np.arange(k) * m + i)
        w_blocks.append(jnp.repeat(W_w.T[:, idx], n, axis=1))      # (p, k*n)
        b_blocks.append(jnp.repeat(W_b[idx], n))
    fused_w = jnp.concatenate([g_cols] + w_blocks, axis=1)         # (p, (m+1)*k*n)
    fused_b = jnp.concatenate([g_bias] + b_blocks)[None, :]        # (1, (m+1)*k*n)
    # Selector-sum matrix with the softmax n-rescale folded in:
    # R[kk*n + j, j'] = n if j == j' else 0.
    R = jnp.asarray(
        ((np.arange(kn)[:, None] % n) == np.arange(n)[None, :]).astype(np.float32)
        * float(n))

    # --- Batch tiling ---
    # Derive a tile that usually divides B exactly (no full-array pad copy);
    # keep >= 2 grid steps when there is enough work so the "parallel" batch
    # axis can shard across v7x's two TensorCores.
    num_steps = pl.cdiv(B, tile_b)
    if B >= 1024:
        num_steps = max(num_steps, 2)
    tb = _round_up(pl.cdiv(B, num_steps), 8)
    B_pad = num_steps * tb
    x_p = x if B_pad == B else jnp.pad(x, ((0, B_pad - B), (0, 0)))

    kernel = functools.partial(_per_example_gate_kernel, k=k, m=m, n=n,
                               gamma=float(gamma))
    out = pl.pallas_call(
        kernel,
        out_shape=jax.ShapeDtypeStruct((B_pad, n), x.dtype),
        grid=(num_steps,),
        in_specs=[
            pl.BlockSpec((tb, p), lambda i: (i, 0)),        # x: streamed batch tile
            pl.BlockSpec((p, width), lambda i: (0, 0)),     # fused weight: resident
            pl.BlockSpec((1, width), lambda i: (0, 0)),     # fused bias:   resident
            pl.BlockSpec((kn, n), lambda i: (0, 0)),        # selector-sum:  resident
        ],
        out_specs=pl.BlockSpec((tb, n), lambda i: (i, 0)),
        compiler_params=pltpu.CompilerParams(
            dimension_semantics=("parallel",),
            vmem_limit_bytes=32 * 1024 * 1024,
        ),
    )(x_p, fused_w, fused_b, R)
    return out if B_pad == B else out[:B]


def _smooth_step_ref(t, gamma):
    lower = -gamma / 2.0
    upper = gamma / 2.0
    poly = (-2.0 / gamma ** 3) * t ** 3 + (3.0 / (2.0 * gamma)) * t + 0.5
    return jnp.where(t <= lower, 0.0, jnp.where(t >= upper, 1.0, poly))


def _reference(x, G_w, G_b, W_w, W_b, *, k, m, gamma=0.5):
    """Pure-JAX mirror of the PyTorch forward, for verification."""
    B = x.shape[0]
    n = 2 ** m
    gates = (x @ W_w.T + W_b).reshape(B, k, m)
    soft = _smooth_step_ref(gates, gamma)
    codes = ((jnp.arange(n)[:, None] >> jnp.arange(m)[None, :]) & 1).astype(jnp.float32)
    probs = soft[:, :, None, :] * codes[None, None] + \
        (1.0 - soft[:, :, None, :]) * (1.0 - codes[None, None])
    selector_probs = jnp.prod(probs, axis=-1)            # (B, k, n)
    weights = jax.nn.softmax(x @ G_w.T + G_b, axis=1)    # (B, k)
    return jnp.einsum('bk,bkn->bn', weights, selector_probs)


if __name__ == "__main__":
    p, k, m = 32, 4, 3
    gamma = 0.5

    key = jax.random.PRNGKey(0)
    kx, kgw, kgb, kww, kwb = jax.random.split(key, 5)
    G_w = 0.1 * jax.random.normal(kgw, (k, p), dtype=jnp.float32)
    G_b = 0.1 * jax.random.normal(kgb, (k,), dtype=jnp.float32)
    W_w = 0.1 * jax.random.normal(kww, (k * m, p), dtype=jnp.float32)
    W_b = 0.1 * jax.random.normal(kwb, (k * m,), dtype=jnp.float32)

    # B=8: single step, no pad.  B=10: pad-and-slice remainder path.
    # B=2048: >=2-step grid (exercises the "parallel" batch sharding path).
    for B in (8, 10, 2048):
        xb = jax.random.normal(jax.random.fold_in(kx, B), (B, p), dtype=jnp.float32)
        out = per_example_gate(xb, G_w, G_b, W_w, W_b, k=k, m=m, gamma=gamma)
        out = jax.block_until_ready(out)
        ref = _reference(xb, G_w, G_b, W_w, W_b, k=k, m=m, gamma=gamma)
        np.testing.assert_allclose(np.asarray(out), np.asarray(ref),
                                   atol=1e-5, rtol=1e-5)

    print("KERNEL_OK")
</pallas_src>

<mosaic_0001>
module attributes {stable_mosaic.version = 11 : i64} {
  func.func @_per_example_gate_kernel(%arg0: i32, %arg1: memref<8x32xf32, #tpu.memory_space<vmem>>, %arg2: memref<32x128xf32, #tpu.memory_space<vmem>>, %arg3: memref<1x128xf32, #tpu.memory_space<vmem>>, %arg4: memref<32x8xf32, #tpu.memory_space<vmem>>, %arg5: memref<8x8xf32, #tpu.memory_space<vmem>>) attributes {dimension_semantics = [#tpu.dimension_semantics<parallel>], iteration_bounds = array<i64: 1>, scalar_prefetch = 0 : i64, scratch_operands = 0 : i64, tpu.core_type = #tpu.core_type<tc>, window_params = [{transform_indices = @transform_0, window_bounds = array<i64: 8, 32>}, {pipeline_mode = #tpu.pipeline_mode<synchronous>, transform_indices = @transform_1, window_bounds = array<i64: 32, 128>}, {pipeline_mode = #tpu.pipeline_mode<synchronous>, transform_indices = @transform_2, window_bounds = array<i64: 1, 128>}, {pipeline_mode = #tpu.pipeline_mode<synchronous>, transform_indices = @transform_3, window_bounds = array<i64: 32, 8>}, {transform_indices = @transform_4, window_bounds = array<i64: 8, 8>}]} {
    %c0 = arith.constant 0 : index
    %c0_0 = arith.constant 0 : index
    %0 = vector.load %arg1[%c0, %c0_0] : memref<8x32xf32, #tpu.memory_space<vmem>>, vector<8x32xf32>
    %c0_1 = arith.constant 0 : index
    %c0_2 = arith.constant 0 : index
    %1 = vector.load %arg2[%c0_1, %c0_2] : memref<32x128xf32, #tpu.memory_space<vmem>>, vector<32x128xf32>
    %cst = arith.constant dense<0.000000e+00> : vector<8x128xf32>
    %2 = tpu.matmul %0, %1, %cst {dimension_numbers = #tpu.dot_dimension_numbers<[1], [0], [0], [1], [0, 0, 1, 1], [], []>} : vector<8x32xf32>, vector<32x128xf32>, vector<8x128xf32> -> vector<8x128xf32>
    %c0_3 = arith.constant 0 : index
    %c0_4 = arith.constant 0 : index
    %3 = vector.load %arg3[%c0_3, %c0_4] : memref<1x128xf32, #tpu.memory_space<vmem>>, vector<1x128xf32>
    %4 = vector.broadcast %3 : vector<1x128xf32> to vector<8x128xf32>
    %5 = arith.addf %2, %4 : vector<8x128xf32>
    %6 = vector.extract_strided_slice %5 {offsets = [0, 0], sizes = [8, 32], strides = [1, 1]} : vector<8x128xf32> to vector<8x32xf32>
    %7 = vector.extract_strided_slice %5 {offsets = [0, 32], sizes = [8, 96], strides = [1, 1]} : vector<8x128xf32> to vector<8x96xf32>
    %8 = arith.mulf %7, %7 : vector<8x96xf32>
    %cst_5 = arith.constant -1.600000e+01 : f32
    %9 = vector.broadcast %cst_5 : f32 to vector<8x96xf32>
    %10 = arith.mulf %9, %8 : vector<8x96xf32>
    %11 = arith.mulf %10, %7 : vector<8x96xf32>
    %cst_6 = arith.constant 3.000000e+00 : f32
    %12 = vector.broadcast %cst_6 : f32 to vector<8x96xf32>
    %13 = arith.mulf %12, %7 : vector<8x96xf32>
    %14 = arith.addf %11, %13 : vector<8x96xf32>
    %cst_7 = arith.constant 5.000000e-01 : f32
    %15 = vector.broadcast %cst_7 : f32 to vector<8x96xf32>
    %16 = arith.addf %14, %15 : vector<8x96xf32>
    %cst_8 = arith.constant -2.500000e-01 : f32
    %17 = vector.broadcast %cst_8 : f32 to vector<8x96xf32>
    %18 = arith.cmpf ole, %7, %17 : vector<8x96xf32>
    %cst_9 = arith.constant 2.500000e-01 : f32
    %19 = vector.broadcast %cst_9 : f32 to vector<8x96xf32>
    %20 = arith.cmpf oge, %7, %19 : vector<8x96xf32>
    %cst_10 = arith.constant 1.000000e+00 : f32
    %21 = vector.broadcast %cst_10 : f32 to vector<8x96xf32>
    %22 = arith.select %20, %21, %16 : vector<8x96xi1>, vector<8x96xf32>
    %cst_11 = arith.constant 0.000000e+00 : f32
    %23 = vector.broadcast %cst_11 : f32 to vector<8x96xf32>
    %24 = arith.select %18, %23, %22 : vector<8x96xi1>, vector<8x96xf32>
    %25 = tpu.iota {dimensions = array<i32: 1>} : vector<1x32xi32>
    %c7_i32 = arith.constant 7 : i32
    %26 = vector.broadcast %c7_i32 : i32 to vector<1x32xi32>
    %27 = arith.andi %25, %26 : vector<1x32xi32>
    %28 = vector.extract_strided_slice %24 {offsets = [0, 0], sizes = [8, 32], strides = [1, 1]} : vector<8x96xf32> to vector<8x32xf32>
    %c0_i32 = arith.constant 0 : i32
    %29 = vector.broadcast %c0_i32 : i32 to vector<1x32xi32>
    %30 = arith.shrsi %27, %29 : vector<1x32xi32>
    %c1_i32 = arith.constant 1 : i32
    %31 = vector.broadcast %c1_i32 : i32 to vector<1x32xi32>
    %32 = arith.andi %30, %31 : vector<1x32xi32>
    %c1_i32_12 = arith.constant 1 : i32
    %33 = vector.broadcast %c1_i32_12 : i32 to vector<1x32xi32>
    %34 = arith.cmpi eq, %32, %33 : vector<1x32xi32>
    %cst_13 = arith.constant 1.000000e+00 : f32
    %35 = vector.broadcast %cst_13 : f32 to vector<8x32xf32>
    %36 = arith.subf %35, %28 : vector<8x32xf32>
    %37 = vector.shape_cast %34 : vector<1x32xi1> to vector<1x32xi1>
    %38 = vector.broadcast %37 : vector<1x32xi1> to vector<8x32xi1>
    %39 = arith.select %38, %28, %36 : vector<8x32xi1>, vector<8x32xf32>
    %40 = vector.extract_strided_slice %24 {offsets = [0, 32], sizes = [8, 32], strides = [1, 1]} : vector<8x96xf32> to vector<8x32xf32>
    %c1_i32_14 = arith.constant 1 : i32
    %41 = vector.broadcast %c1_i32_14 : i32 to vector<1x32xi32>
    %42 = arith.shrsi %27, %41 : vector<1x32xi32>
    %c1_i32_15 = arith.constant 1 : i32
    %43 = vector.broadcast %c1_i32_15 : i32 to vector<1x32xi32>
    %44 = arith.andi %42, %43 : vector<1x32xi32>
    %c1_i32_16 = arith.constant 1 : i32
    %45 = vector.broadcast %c1_i32_16 : i32 to vector<1x32xi32>
    %46 = arith.cmpi eq, %44, %45 : vector<1x32xi32>
    %cst_17 = arith.constant 1.000000e+00 : f32
    %47 = vector.broadcast %cst_17 : f32 to vector<8x32xf32>
    %48 = arith.subf %47, %40 : vector<8x32xf32>
    %49 = vector.shape_cast %46 : vector<1x32xi1> to vector<1x32xi1>
    %50 = vector.broadcast %49 : vector<1x32xi1> to vector<8x32xi1>
    %51 = arith.select %50, %40, %48 : vector<8x32xi1>, vector<8x32xf32>
    %52 = arith.mulf %39, %51 : vector<8x32xf32>
    %53 = vector.extract_strided_slice %24 {offsets = [0, 64], sizes = [8, 32], strides = [1, 1]} : vector<8x96xf32> to vector<8x32xf32>
    %c2_i32 = arith.constant 2 : i32
    %54 = vector.broadcast %c2_i32 : i32 to vector<1x32xi32>
    %55 = arith.shrsi %27, %54 : vector<1x32xi32>
    %c1_i32_18 = arith.constant 1 : i32
    %56 = vector.broadcast %c1_i32_18 : i32 to vector<1x32xi32>
    %57 = arith.andi %55, %56 : vector<1x32xi32>
    %c1_i32_19 = arith.constant 1 : i32
    %58 = vector.broadcast %c1_i32_19 : i32 to vector<1x32xi32>
    %59 = arith.cmpi eq, %57, %58 : vector<1x32xi32>
    %cst_20 = arith.constant 1.000000e+00 : f32
    %60 = vector.broadcast %cst_20 : f32 to vector<8x32xf32>
    %61 = arith.subf %60, %53 : vector<8x32xf32>
    %62 = vector.shape_cast %59 : vector<1x32xi1> to vector<1x32xi1>
    %63 = vector.broadcast %62 : vector<1x32xi1> to vector<8x32xi1>
    %64 = arith.select %63, %53, %61 : vector<8x32xi1>, vector<8x32xf32>
    %65 = arith.mulf %52, %64 : vector<8x32xf32>
    %cst_21 = arith.constant dense<0xFF800000> : vector<8xf32>
    %66 = vector.multi_reduction <maximumf>, %6, %cst_21 [1] : vector<8x32xf32> to vector<8xf32>
    %67 = vector.shape_cast %66 : vector<8xf32> to vector<8x1xf32>
    %68 = vector.broadcast %67 : vector<8x1xf32> to vector<8x32xf32>
    %69 = arith.subf %6, %68 : vector<8x32xf32>
    %70 = math.exp %69 : vector<8x32xf32>
    %cst_22 = arith.constant dense<0.000000e+00> : vector<8xf32>
    %71 = vector.multi_reduction <add>, %70, %cst_22 [1] : vector<8x32xf32> to vector<8xf32>
    %72 = vector.shape_cast %71 : vector<8xf32> to vector<8x1xf32>
    %73 = tpu.reciprocal %72 {approx = true} : vector<8x1xf32> -> vector<8x1xf32>
    %74 = arith.mulf %72, %73 : vector<8x1xf32>
    %cst_23 = arith.constant 2.000000e+00 : f32
    %75 = vector.broadcast %cst_23 : f32 to vector<8x1xf32>
    %76 = arith.subf %75, %74 : vector<8x1xf32>
    %77 = arith.mulf %73, %76 : vector<8x1xf32>
    %78 = vector.broadcast %77 : vector<8x1xf32> to vector<8x32xf32>
    %79 = arith.mulf %70, %78 : vector<8x32xf32>
    %80 = arith.mulf %79, %65 : vector<8x32xf32>
    %c0_24 = arith.constant 0 : index
    %c0_25 = arith.constant 0 : index
    %81 = vector.load %arg4[%c0_24, %c0_25] : memref<32x8xf32, #tpu.memory_space<vmem>>, vector<32x8xf32>
    %cst_26 = arith.constant dense<0.000000e+00> : vector<8x8xf32>
    %82 = tpu.matmul %80, %81, %cst_26 {dimension_numbers = #tpu.dot_dimension_numbers<[1], [0], [0], [1], [0, 0, 1, 1], [], []>} : vector<8x32xf32>, vector<32x8xf32>, vector<8x8xf32> -> vector<8x8xf32>
    %c0_27 = arith.constant 0 : index
    %c0_28 = arith.constant 0 : index
    %83 = vector.load %arg5[%c0_27, %c0_28] : memref<8x8xf32, #tpu.memory_space<vmem>>, vector<8x8xf32>
    tpu.vector_store %arg5[%c0_27, %c0_28], %82 {strides = array<i32>} : memref<8x8xf32, #tpu.memory_space<vmem>>, vector<8x8xf32>,
    return
  }
  func.func @transform_0(%arg0: i32) -> (i32, i32) {
    %c0_i32 = arith.constant 0 : i32
    %c0_i32_0 = arith.constant 0 : i32
    return %arg0, %c0_i32 : i32, i32
  }
  func.func @transform_1(%arg0: i32) -> (i32, i32) {
    %c0_i32 = arith.constant 0 : i32
    %c0_i32_0 = arith.constant 0 : i32
    %c0_i32_1 = arith.constant 0 : i32
    return %c0_i32, %c0_i32_0 : i32, i32
  }
  func.func @transform_2(%arg0: i32) -> (i32, i32) {
    %c0_i32 = arith.constant 0 : i32
    %c0_i32_0 = arith.constant 0 : i32
    %c0_i32_1 = arith.constant 0 : i32
    return %c0_i32, %c0_i32_0 : i32, i32
  }
  func.func @transform_3(%arg0: i32) -> (i32, i32) {
    %c0_i32 = arith.constant 0 : i32
    %c0_i32_0 = arith.constant 0 : i32
    %c0_i32_1 = arith.constant 0 : i32
    return %c0_i32, %c0_i32_0 : i32, i32
  }
  func.func @transform_4(%arg0: i32) -> (i32, i32) {
    %c0_i32 = arith.constant 0 : i32
    %c0_i32_0 = arith.constant 0 : i32
    return %arg0, %c0_i32 : i32, i32
  }
}

</mosaic_0001>

<llo_original>
// kernel: tpu_custom_call.1
$region0: #{tpu_custom_call.1}
  #allocation0 [shape = 'u32[]', space=smem, size = 0x4, offset = 0x4, fixed_abs, tag = 'smem constant byte address 0x4 - core index']
  #allocation1 [shape = 'u32[144,128]{1,0:T(1,128)}', space=vmem, size = 0x12000, scoped, tag = 'internal scratch']
  %s0 = inlined_call_operand.vmem [shape: f32[8,32], index: 0, kind: input, shape index: {}]
  %s1 = inlined_call_operand.vmem [shape: f32[32,128], index: 1, kind: input, shape index: {}]
  %s2 = inlined_call_operand.vmem [shape: f32[1,128], index: 2, kind: input, shape index: {}]
  %s3 = inlined_call_operand.vmem [shape: f32[32,8], index: 3, kind: input, shape index: {}]
  %s4 = inlined_call_operand.hbm [shape: f32[8,8], index: 4, kind: output, shape index: {}]
  %s5 = sld [smem:[#allocation0]]
  $region26: #{tpu_custom_call.1} parent=0
    _
  %s7 = ssub.s32 1, %s5
  %s8 = scalar_select 0, %s7, %s5
  $region1: #{tpu_custom_call.1} parent=0
    #allocation2 [shape = 'u8[4096]{0}', space=vmem, size = 0x1000, scoped, tag = 'output window, operand 0, single buffered']
    #allocation3 [shape = 's32[1]{0}', space=sflag, size = 0x4, scoped, tag = 'scoped memory for tpu_custom_call.1']
    %9 = vsyncpa [#allocation3], 0
    // Predicated region
    $region2: #{tpu_custom_call.1} parent=1 // pred_check
      _
    $region3: #{tpu_custom_call.1} parent=1 // pred_check_branch
      %11 = sbr.rel (0) target = $region5
    $region4: #{tpu_custom_call.1} parent=1 // pred_region
      _
    $region5: #{tpu_custom_call.1} parent=1 // pred_fallthru
      _
    // Predicated region
    $region6: #{tpu_custom_call.1} parent=1 // pred_check
      _
    $region7: #{tpu_custom_call.1} parent=1 // pred_check_branch
      %13 = sbr.rel (0) target = $region9
    $region8: #{tpu_custom_call.1} parent=1 // pred_region
      _
    $region9: #{tpu_custom_call.1} parent=1 // pred_fallthru
      _
    // Predicated region
    $region10: #{tpu_custom_call.1} parent=1 // pred_check
      _
    $region11: #{tpu_custom_call.1} parent=1 // pred_check_branch
      %15 = sbr.rel (0) target = $region13
    $region12: #{tpu_custom_call.1} parent=1 // pred_region
      _
    $region13: #{tpu_custom_call.1} parent=1 // pred_fallthru
      _
    // Predicated region
    $region14: #{tpu_custom_call.1} parent=1 // pred_check
      _
    $region15: #{tpu_custom_call.1} parent=1 // pred_check_branch
      %17 = sbr.rel (0) target = $region17
    $region16: #{tpu_custom_call.1} parent=1 // pred_region
      _
    $region17: #{tpu_custom_call.1} parent=1 // pred_fallthru
      _
    %v18 = vld [vmem:[%s0] sm:$0xff]
    %v19 = vld [vmem:[%s1] sm:$0xff]
    %v20 = vld [vmem:[%s1 + $0x8] sm:$0xff]
    %v21 = vld [vmem:[%s1 + $0x10] sm:$0xff]
    %v22 = vld [vmem:[%s1 + $0x18] sm:$0xff]
    %v23 = vld [vmem:[%s2] sm:$0x1]
    %v25 = vlaneseq
    %v26 = vshrl.u32 %v25, 7
    %v27 = vsub.s32 0, %v26
    %v28 = vrot.slane %v23, %v27
    %vm30 = vcmask 261120
    %v32 = vsel %vm30, %v18, 0
    %34 = vmatprep.subr.mxu0 0.0
    %35 = vmatpush1.msra.mxu0 0.0
    %36 = vmatprep.subr.mxu0 0.0
    %37 = vmatpush1.msra.mxu0 0.0
    %38 = vmatprep.subr.mxu0 0.0
    %39 = vmatpush1.msra.mxu0 0.0
    %40 = vmatprep.subr.mxu0 0.0
    %41 = vmatpush1.msra.mxu0 0.0
    %42 = vmatprep.subr.mxu0 0.0
    %43 = vmatpush1.msra.mxu0 0.0
    %44 = vmatprep.subr.mxu0 0.0
    %45 = vmatpush1.msra.mxu0 0.0
    %46 = vmatprep.subr.mxu0 0.0
    %47 = vmatpush1.msra.mxu0 0.0
    %48 = vmatprep.subr.mxu0 0.0
    %49 = vmatpush1.msra.mxu0 0.0
    %50 = vmatprep.subr.mxu0 0.0
    %51 = vmatpush1.msra.mxu0 0.0
    %52 = vmatprep.subr.mxu0 0.0
    %53 = vmatpush1.msra.mxu0 0.0
    %54 = vmatprep.subr.mxu0 0.0
    %55 = vmatpush1.msra.mxu0 0.0
    %56 = vmatprep.subr.mxu0 0.0
    %57 = vmatpush1.msra.mxu0 0.0
    %58 = vmatprep.subr.mxu0 0.0
    %59 = vmatpush1.msra.mxu0 %v22
    %60 = vmatprep.subr.mxu0 0.0
    %61 = vmatpush1.msra.mxu0 %v21
    %62 = vmatprep.subr.mxu0 0.0
    %63 = vmatpush1.msra.mxu0 %v20
    %64 = vmatprep.subr.mxu0 0.0
    %65 = vmatpush1.msra.mxu0 %v19
    %66 = vmatprep.subr.mxu0 0.0
    %67 = vmatpush2.msra.mxu0 0.0
    %68 = vmatprep.subr.mxu0 0.0
    %69 = vmatpush2.msra.mxu0 0.0
    %70 = vmatprep.subr.mxu0 0.0
    %71 = vmatpush2.msra.mxu0 0.0
    %72 = vmatprep.subr.mxu0 0.0
    %73 = vmatpush2.msra.mxu0 0.0
    %74 = vmatprep.subr.mxu0 0.0
    %75 = vmatpush2.msra.mxu0 0.0
    %76 = vmatprep.subr.mxu0 0.0
    %77 = vmatpush2.msra.mxu0 0.0
    %78 = vmatprep.subr.mxu0 0.0
    %79 = vmatpush2.msra.mxu0 0.0
    %80 = vmatprep.subr.mxu0 0.0
    %81 = vmatpush2.msra.mxu0 0.0
    %82 = vmatprep.subr.mxu0 0.0
    %83 = vmatpush2.msra.mxu0 0.0
    %84 = vmatprep.subr.mxu0 0.0
    %85 = vmatpush2.msra.mxu0 0.0
    %86 = vmatprep.subr.mxu0 0.0
    %87 = vmatpush2.msra.mxu0 0.0
    %88 = vmatprep.subr.mxu0 0.0
    %89 = vmatpush2.msra.mxu0 0.0
    %90 = vmatprep.subr.mxu0 0.0
    %91 = vmatpush2.msra.mxu0 0.0
    %92 = vmatprep.subr.mxu0 0.0
    %93 = vmatpush2.msra.mxu0 0.0
    %94 = vmatprep.subr.mxu0 0.0
    %95 = vmatpush2.msra.mxu0 0.0
    %96 = vmatprep.subr.mxu0 0.0
    %97 = vmatpush2.msra.mxu0 0.0
    %98 = vmatprep.mubr.f32.mxu0 0.0
    %99 = vmatmul.mubr.f32.gmra.mxu0 %v32
    %v100 = vpop.f32.mrf.mxu0
    %v101 = vadd.f32 %v28, %v100
    %v102 = vpop.f32.mrf.mxu0
    %103 = vdwg.mxu0
    %v104 = vmul.f32 %v101, %v101
    %v105 = vmul.f32 %v104, -16.0
    %v106 = vmul.f32 %v105, %v101
    %v107 = vmul.f32 %v101, 3.0
    %v108 = vadd.f32 %v106, %v107
    %v109 = vadd.f32 %v108, 0.5
    %vm110 = vcmp.le.f32.partialorder %v101, -0.25
    %vm111 = vcmp.ge.f32.partialorder %v101, 0.25
    %v112 = vsel %vm111, 1.0, %v109
    %v113 = vsel %vm110, 0.0, %v112
    %v114 = vlaneseq
    %v115 = vand.u32 %v114, 127
    %v116 = vand.u32 %v115, 7
    %v117 = vand.u32 %v116, 1
    %vm118 = vcmp.eq.s32.totalorder %v117, 1
    %v119 = vsub.f32 1.0, %v113
    %v120 = vsel %vm118, 1, 0
    %vm121 = vcmp.eq.s32.totalorder %v120, 1
    %123 = vrot.lane.b32.xlu0 %v113, 96
    %v124 = vpop.permute.xlu0 %123
    %127 = vrot.lane.b32.xlu0 %v119, 96
    %v128 = vpop.permute.xlu0 %127
    %v130 = vsel %vm121, %v124, %v128
    %v131 = vshra.s32 %v116, 1
    %v132 = vand.u32 %v131, 1
    %vm133 = vcmp.eq.s32.totalorder %v132, 1
    %v134 = vsel %vm133, 1, 0
    %vm135 = vcmp.eq.s32.totalorder %v134, 1
    %136 = vrot.lane.b32.xlu0 %v113, 64
    %v137 = vpop.permute.xlu0 %136
    %139 = vrot.lane.b32.xlu0 %v119, 64
    %v140 = vpop.permute.xlu0 %139
    %v142 = vsel %vm135, %v137, %v140
    %v143 = vmul.f32 %v130, %v142
    %v144 = vshra.s32 %v116, 2
    %v145 = vand.u32 %v144, 1
    %vm146 = vcmp.eq.s32.totalorder %v145, 1
    %v147 = vsel %vm146, 1, 0
    %vm148 = vcmp.eq.s32.totalorder %v147, 1
    %149 = vrot.lane.b32.xlu0 %v113, 32
    %v150 = vpop.permute.xlu0 %149
    %152 = vrot.lane.b32.xlu0 %v119, 32
    %v153 = vpop.permute.xlu0 %152
    %v155 = vsel %vm148, %v150, %v153
    %v156 = vmul.f32 %v143, %v155
    %v157 = vsel %vm30, %v101, -inf
    %158 = vmax.xlane.f32.xlu0 %v157
    %v159 = vpop.xlane.xlu0 %158
    %v160 = vsub.f32 %v101, %v159
    %v161 = vmul.f32 %v160, 1.442695
    %v162 = vpow.pop %v161
    %v163 = vsel %vm30, %v162, 0.0
    %164 = vadd.xlane.f32.xlu0 %v163
    %v165 = vpop.xlane.xlu0 %164
    %v166 = vrcp.pop %v165
    %v167 = vmul.f32 %v165, %v166
    %v168 = vsub.f32 2.0, %v167
    %v169 = vmul.f32 %v166, %v168
    %v170 = vmul.f32 %v162, %v169
    %v171 = vmul.f32 %v170, %v156
    %v172 = vld [vmem:[%s3] sm:$0xff]
    %v173 = vld [vmem:[%s3 + $0x8] sm:$0xff]
    %v174 = vld [vmem:[%s3 + $0x10] sm:$0xff]
    %v175 = vld [vmem:[%s3 + $0x18] sm:$0xff]
    %v177 = vsel %vm30, %v171, 0
    %179 = vmatprep.subr.mxu0 0.0
    %180 = vmatpush1.msra.mxu0 0.0
    %181 = vmatprep.subr.mxu0 0.0
    %182 = vmatpush1.msra.mxu0 0.0
    %183 = vmatprep.subr.mxu0 0.0
    %184 = vmatpush1.msra.mxu0 0.0
    %185 = vmatprep.subr.mxu0 0.0
    %186 = vmatpush1.msra.mxu0 0.0
    %187 = vmatprep.subr.mxu0 0.0
    %188 = vmatpush1.msra.mxu0 0.0
    %189 = vmatprep.subr.mxu0 0.0
    %190 = vmatpush1.msra.mxu0 0.0
    %191 = vmatprep.subr.mxu0 0.0
    %192 = vmatpush1.msra.mxu0 0.0
    %193 = vmatprep.subr.mxu0 0.0
    %194 = vmatpush1.msra.mxu0 0.0
    %195 = vmatprep.subr.mxu0 0.0
    %196 = vmatpush1.msra.mxu0 0.0
    %197 = vmatprep.subr.mxu0 0.0
    %198 = vmatpush1.msra.mxu0 0.0
    %199 = vmatprep.subr.mxu0 0.0
    %200 = vmatpush1.msra.mxu0 0.0
    %201 = vmatprep.subr.mxu0 0.0
    %202 = vmatpush1.msra.mxu0 0.0
    %203 = vmatprep.subr.mxu0 0.0
    %204 = vmatpush1.msra.mxu0 %v175
    %205 = vmatprep.subr.mxu0 0.0
    %206 = vmatpush1.msra.mxu0 %v174
    %207 = vmatprep.subr.mxu0 0.0
    %208 = vmatpush1.msra.mxu0 %v173
    %209 = vmatprep.subr.mxu0 0.0
    %210 = vmatpush1.msra.mxu0 %v172
    %211 = vmatprep.subr.mxu0 0.0
    %212 = vmatpush2.msra.mxu0 0.0
    %213 = vmatprep.subr.mxu0 0.0
    %214 = vmatpush2.msra.mxu0 0.0
    %215 = vmatprep.subr.mxu0 0.0
    %216 = vmatpush2.msra.mxu0 0.0
    %217 = vmatprep.subr.mxu0 0.0
    %218 = vmatpush2.msra.mxu0 0.0
    %219 = vmatprep.subr.mxu0 0.0
    %220 = vmatpush2.msra.mxu0 0.0
    %221 = vmatprep.subr.mxu0 0.0
    %222 = vmatpush2.msra.mxu0 0.0
    %223 = vmatprep.subr.mxu0 0.0
    %224 = vmatpush2.msra.mxu0 0.0
    %225 = vmatprep.subr.mxu0 0.0
    %226 = vmatpush2.msra.mxu0 0.0
    %227 = vmatprep.subr.mxu0 0.0
    %228 = vmatpush2.msra.mxu0 0.0
    %229 = vmatprep.subr.mxu0 0.0
    %230 = vmatpush2.msra.mxu0 0.0
    %231 = vmatprep.subr.mxu0 0.0
    %232 = vmatpush2.msra.mxu0 0.0
    %233 = vmatprep.subr.mxu0 0.0
    %234 = vmatpush2.msra.mxu0 0.0
    %235 = vmatprep.subr.mxu0 0.0
    %236 = vmatpush2.msra.mxu0 0.0
    %237 = vmatprep.subr.mxu0 0.0
    %238 = vmatpush2.msra.mxu0 0.0
    %239 = vmatprep.subr.mxu0 0.0
    %240 = vmatpush2.msra.mxu0 0.0
    %241 = vmatprep.subr.mxu0 0.0
    %242 = vmatpush2.msra.mxu0 0.0
    %243 = vmatprep.mubr.f32.mxu0 0.0
    %244 = vmatmul.mubr.f32.gmra.mxu0 %v177
    %v245 = vpop.f32.mrf.mxu0
    %v246 = vadd.f32 0.0, %v245
    %v247 = vpop.f32.mrf.mxu0
    %248 = vdwg.mxu0
    %vm249 = vcmask 64512
    %250 = vst.msk [vmem:[#allocation2] sm:$0xff] %vm249, %v246
    // Predicated region
    $region18: #{tpu_custom_call.1} parent=1 // pred_check
      _
    $region19: #{tpu_custom_call.1} parent=1 // pred_check_branch
      %252 = sbr.rel (0) target = $region21
    $region20: #{tpu_custom_call.1} parent=1 // pred_region
      %s254 = ssub.s32 128, 128
      %255 = vsyncadd [#allocation3], %s254
      %s257 = sshll.u32 [#allocation2], 4
      %s258 = int_to_ptr.vmem [resolvable:$true] %s257
      %260 = dma.vmem_to_hbm [thread:$0]  %s258, 128, %s4, [#allocation3]
    $region21: #{tpu_custom_call.1} parent=1 // pred_fallthru
      _
    // Predicated region
    $region22: #{tpu_custom_call.1} parent=1 // pred_check
      _
    $region23: #{tpu_custom_call.1} parent=1 // pred_check_branch
      %262 = sbr.rel (0) target = $region25
    $region24: #{tpu_custom_call.1} parent=1 // pred_region
      %263 = dma.done [#allocation3], 128
    $region25: #{tpu_custom_call.1} parent=1 // pred_fallthru
      _
    %264 = vsyncpa [#allocation3], 1

</llo_original>
